<compile_context>
chip_gen: v7x
topology: tpu7x:2x2x1
jax: 0.10.0
libtpu: 0.0.40
codegen_flags: <defaults>
</compile_context>

<pallas_src>
import functools

import jax
import jax.numpy as jnp
from jax.experimental import pallas as pl
from jax.experimental.pallas import tpu as pltpu


def _round_up(x, m):
    return ((x + m - 1) // m) * m


def _fc_kernel(x1_ref, x2_ref, w1_ref, w2_ref, b_ref, o_ref):
    # Two MXU dots (replaces the HBM concat) accumulated in f32,
    # sigmoid on the EUP, bias add on the VPU -- all in VMEM.
    acc = jnp.dot(x1_ref[...], w1_ref[...], preferred_element_type=jnp.float32)
    acc = acc + jnp.dot(x2_ref[...], w2_ref[...], preferred_element_type=jnp.float32)
    o_ref[...] = (jax.nn.sigmoid(acc) + b_ref[...]).astype(o_ref.dtype)


@functools.partial(jax.jit, static_argnames=("tm",))
def fc_pallas(x1, x2, w1, w2, b, *, tm=512):
    """Computes sigmoid(concat(x1, x2) @ concat(w1, w2)) + b without materializing the concat.

    x1: (M, K1), x2: (M, K2), w1: (K1, O), w2: (K2, O), b: (O,)  -> (M, O), all float32.
    """
    M, K1 = x1.shape
    M2, K2 = x2.shape
    assert M == M2
    K1w, O = w1.shape
    K2w, O2 = w2.shape
    assert K1 == K1w and K2 == K2w and O == O2

    # Lane-dense output: pad O up to a multiple of 128 (zero weight cols / bias entries).
    O_pad = _round_up(O, 128)
    if O_pad != O:
        pad = O_pad - O
        w1 = jnp.pad(w1, ((0, 0), (0, pad)))
        w2 = jnp.pad(w2, ((0, 0), (0, pad)))
        b = jnp.pad(b, ((0, pad),))
    b2 = b.reshape(1, O_pad)

    # M tiling: multiple of 8 sublanes, capped at 512 rows per tile (memory-bound sweet spot).
    tm = min(tm, _round_up(M, 8))
    grid = (pl.cdiv(M, tm),)

    # Explicit scoped-VMEM budget: 2x double-buffered (x1 + x2 + out) tiles + resident w + b,
    # with generous headroom, clamped so it fits every chip's scoped default region.
    vmem_need = 4 * (2 * (tm * K1 + tm * K2 + tm * O_pad) + (K1 + K2 + 1) * O_pad)
    vmem_limit = int(min(max(2 * vmem_need, 8 * 1024 * 1024), 32 * 1024 * 1024))

    cost = pl.CostEstimate(
        flops=2 * M * (K1 + K2) * O_pad,
        transcendentals=M * O_pad,
        bytes_accessed=4 * (M * K1 + M * K2 + (K1 + K2) * O_pad + O_pad + M * O_pad),
    )

    out = pl.pallas_call(
        _fc_kernel,
        out_shape=jax.ShapeDtypeStruct((M, O_pad), jnp.float32),
        grid_spec=pltpu.PrefetchScalarGridSpec(
            num_scalar_prefetch=0,
            grid=grid,
            in_specs=[
                pl.BlockSpec((tm, K1), lambda i: (i, 0)),      # activations tile
                pl.BlockSpec((tm, K2), lambda i: (i, 0)),      # state tile
                pl.BlockSpec((K1, O_pad), lambda i: (0, 0)),   # weights stay resident
                pl.BlockSpec((K2, O_pad), lambda i: (0, 0)),
                pl.BlockSpec((1, O_pad), lambda i: (0, 0)),    # bias
            ],
            out_specs=pl.BlockSpec((tm, O_pad), lambda i: (i, 0)),
        ),
        compiler_params=pltpu.CompilerParams(
            dimension_semantics=("parallel",),   # independent rows -> megacore sharding on v7x
            vmem_limit_bytes=vmem_limit,
        ),
        cost_estimate=cost,
    )(x1, x2, w1, w2, b2)

    if O_pad != O:
        out = out[:, :O]
    return out


class FC:
    """JAX/Pallas port of libcity DCRNN FC."""

    def __init__(self, num_nodes, input_dim, hid_dim, output_dim, bias_start=0.0, key=None):
        self._num_nodes = num_nodes
        self._input_dim = input_dim
        self._hid_dim = hid_dim
        self._output_dim = output_dim
        input_size = input_dim + hid_dim
        if key is None:
            key = jax.random.PRNGKey(0)
        # torch.nn.init.xavier_normal_: std = sqrt(2 / (fan_in + fan_out))
        std = (2.0 / (input_size + output_dim)) ** 0.5
        self.weight = std * jax.random.normal(key, (input_size, output_dim), dtype=jnp.float32)
        self.biases = jnp.full((output_dim,), bias_start, dtype=jnp.float32)

    def __call__(self, inputs, state):
        batch_size = inputs.shape[0]
        x1 = jnp.reshape(inputs, (batch_size * self._num_nodes, -1))
        x2 = jnp.reshape(state, (batch_size * self._num_nodes, -1))
        # Weight split replaces the concat (no extra HBM pass over activations).
        w1 = self.weight[: self._input_dim]
        w2 = self.weight[self._input_dim:]
        value = fc_pallas(x1, x2, w1, w2, self.biases)
        return jnp.reshape(value, (batch_size, self._num_nodes * self._output_dim))


if __name__ == "__main__":
    # Small, forward-consistent shapes.
    batch = 2
    num_nodes = 16
    input_dim = 4
    hid_dim = 32
    output_dim = 32

    key = jax.random.PRNGKey(0)
    k_in, k_st, k_w = jax.random.split(key, 3)

    inputs = jax.random.normal(k_in, (batch, num_nodes * input_dim), dtype=jnp.float32)
    state = jax.random.normal(k_st, (batch, num_nodes * hid_dim), dtype=jnp.float32)

    fc = FC(num_nodes, input_dim, hid_dim, output_dim, bias_start=0.0, key=k_w)

    out = fc(inputs, state)
    jax.block_until_ready(out)

    # Reference check in plain JAX (same math path as the PyTorch module).
    x_ref = jnp.concatenate(
        [inputs.reshape(batch * num_nodes, -1), state.reshape(batch * num_nodes, -1)], axis=-1
    )
    ref = (jax.nn.sigmoid(x_ref @ fc.weight) + fc.biases).reshape(batch, num_nodes * output_dim)
    assert out.shape == (batch, num_nodes * output_dim)
    assert jnp.allclose(out, ref, atol=1e-5, rtol=1e-5)

    print("KERNEL_OK")
</pallas_src>

<mosaic_0001>
module attributes {stable_mosaic.version = 11 : i64} {
  func.func @_fc_kernel(%arg0: i32, %arg1: memref<32x4xf32, #tpu.memory_space<vmem>>, %arg2: memref<32x32xf32, #tpu.memory_space<vmem>>, %arg3: memref<4x128xf32, #tpu.memory_space<vmem>>, %arg4: memref<32x128xf32, #tpu.memory_space<vmem>>, %arg5: memref<1x128xf32, #tpu.memory_space<vmem>>, %arg6: memref<32x128xf32, #tpu.memory_space<vmem>>) attributes {dimension_semantics = [#tpu.dimension_semantics<parallel>], iteration_bounds = array<i64: 1>, scalar_prefetch = 0 : i64, scratch_operands = 0 : i64, tpu.core_type = #tpu.core_type<tc>, window_params = [{transform_indices = @transform_0, window_bounds = array<i64: 32, 4>}, {transform_indices = @transform_1, window_bounds = array<i64: 32, 32>}, {pipeline_mode = #tpu.pipeline_mode<synchronous>, transform_indices = @transform_2, window_bounds = array<i64: 4, 128>}, {pipeline_mode = #tpu.pipeline_mode<synchronous>, transform_indices = @transform_3, window_bounds = array<i64: 32, 128>}, {pipeline_mode = #tpu.pipeline_mode<synchronous>, transform_indices = @transform_4, window_bounds = array<i64: 1, 128>}, {transform_indices = @transform_5, window_bounds = array<i64: 32, 128>}]} {
    %c0 = arith.constant 0 : index
    %c0_0 = arith.constant 0 : index
    %0 = vector.load %arg1[%c0, %c0_0] : memref<32x4xf32, #tpu.memory_space<vmem>>, vector<32x4xf32>
    %c0_1 = arith.constant 0 : index
    %c0_2 = arith.constant 0 : index
    %1 = vector.load %arg3[%c0_1, %c0_2] : memref<4x128xf32, #tpu.memory_space<vmem>>, vector<4x128xf32>
    %cst = arith.constant dense<0.000000e+00> : vector<32x128xf32>
    %2 = tpu.matmul %0, %1, %cst {dimension_numbers = #tpu.dot_dimension_numbers<[1], [0], [0], [1], [0, 0, 1, 1], [], []>} : vector<32x4xf32>, vector<4x128xf32>, vector<32x128xf32> -> vector<32x128xf32>
    %c0_3 = arith.constant 0 : index
    %c0_4 = arith.constant 0 : index
    %3 = vector.load %arg2[%c0_3, %c0_4] : memref<32x32xf32, #tpu.memory_space<vmem>>, vector<32x32xf32>
    %c0_5 = arith.constant 0 : index
    %c0_6 = arith.constant 0 : index
    %4 = vector.load %arg4[%c0_5, %c0_6] : memref<32x128xf32, #tpu.memory_space<vmem>>, vector<32x128xf32>
    %cst_7 = arith.constant dense<0.000000e+00> : vector<32x128xf32>
    %5 = tpu.matmul %3, %4, %cst_7 {dimension_numbers = #tpu.dot_dimension_numbers<[1], [0], [0], [1], [0, 0, 1, 1], [], []>} : vector<32x32xf32>, vector<32x128xf32>, vector<32x128xf32> -> vector<32x128xf32>
    %6 = arith.addf %2, %5 : vector<32x128xf32>
    %7 = arith.negf %6 : vector<32x128xf32>
    %8 = math.exp %7 : vector<32x128xf32>
    %cst_8 = arith.constant 1.000000e+00 : f32
    %9 = vector.broadcast %cst_8 : f32 to vector<32x128xf32>
    %10 = arith.addf %9, %8 : vector<32x128xf32>
    %11 = arith.divf %9, %10 : vector<32x128xf32>
    %c0_9 = arith.constant 0 : index
    %c0_10 = arith.constant 0 : index
    %12 = vector.load %arg5[%c0_9, %c0_10] : memref<1x128xf32, #tpu.memory_space<vmem>>, vector<1x128xf32>
    %13 = vector.broadcast %12 : vector<1x128xf32> to vector<32x128xf32>
    %14 = arith.addf %11, %13 : vector<32x128xf32>
    %c0_11 = arith.constant 0 : index
    %c0_12 = arith.constant 0 : index
    %15 = vector.load %arg6[%c0_11, %c0_12] : memref<32x128xf32, #tpu.memory_space<vmem>>, vector<32x128xf32>
    tpu.vector_store %arg6[%c0_11, %c0_12], %14 {strides = array<i32>} : memref<32x128xf32, #tpu.memory_space<vmem>>, vector<32x128xf32>,
    return
  }
  func.func @transform_0(%arg0: i32) -> (i32, i32) {
    %c0_i32 = arith.constant 0 : i32
    %c0_i32_0 = arith.constant 0 : i32
    return %arg0, %c0_i32 : i32, i32
  }
  func.func @transform_1(%arg0: i32) -> (i32, i32) {
    %c0_i32 = arith.constant 0 : i32
    %c0_i32_0 = arith.constant 0 : i32
    return %arg0, %c0_i32 : i32, i32
  }
  func.func @transform_2(%arg0: i32) -> (i32, i32) {
    %c0_i32 = arith.constant 0 : i32
    %c0_i32_0 = arith.constant 0 : i32
    %c0_i32_1 = arith.constant 0 : i32
    return %c0_i32, %c0_i32_0 : i32, i32
  }
  func.func @transform_3(%arg0: i32) -> (i32, i32) {
    %c0_i32 = arith.constant 0 : i32
    %c0_i32_0 = arith.constant 0 : i32
    %c0_i32_1 = arith.constant 0 : i32
    return %c0_i32, %c0_i32_0 : i32, i32
  }
  func.func @transform_4(%arg0: i32) -> (i32, i32) {
    %c0_i32 = arith.constant 0 : i32
    %c0_i32_0 = arith.constant 0 : i32
    %c0_i32_1 = arith.constant 0 : i32
    return %c0_i32, %c0_i32_0 : i32, i32
  }
  func.func @transform_5(%arg0: i32) -> (i32, i32) {
    %c0_i32 = arith.constant 0 : i32
    %c0_i32_0 = arith.constant 0 : i32
    return %arg0, %c0_i32 : i32, i32
  }
}

</mosaic_0001>

<llo_original>
// kernel: fc_pallas.1
$region0: #{fc_pallas.1}
  #allocation0 [shape = 'u32[]', space=smem, size = 0x4, offset = 0x4, fixed_abs, tag = 'smem constant byte address 0x4 - core index']
  #allocation1 [shape = 'u32[144,128]{1,0:T(1,128)}', space=vmem, size = 0x12000, scoped, tag = 'internal scratch']
  %s0 = inlined_call_operand.vmem [shape: f32[32,4], index: 0, kind: input, shape index: {}]
  %s1 = inlined_call_operand.vmem [shape: f32[32,32], index: 1, kind: input, shape index: {}]
  %s2 = inlined_call_operand.vmem [shape: f32[4,128], index: 2, kind: input, shape index: {}]
  %s3 = inlined_call_operand.vmem [shape: f32[32,128], index: 3, kind: input, shape index: {}]
  %s4 = inlined_call_operand.vmem [shape: f32[1,128], index: 4, kind: input, shape index: {}]
  %s5 = inlined_call_operand.hbm [shape: f32[32,128], index: 5, kind: output, shape index: {}]
  %s6 = sld [smem:[#allocation0]]
  $region30: #{fc_pallas.1} parent=0
    _
  %s8 = ssub.s32 1, %s6
  %s9 = scalar_select 0, %s8, %s6
  $region1: #{fc_pallas.1} parent=0
    #allocation2 [shape = 'u8[16384]{0}', space=vmem, size = 0x4000, scoped, tag = 'output window, operand 0, single buffered']
    #allocation3 [shape = 's32[1]{0}', space=sflag, size = 0x4, scoped, tag = 'scoped memory for fc_pallas.1']
    %10 = vsyncpa [#allocation3], 0
    // Predicated region
    $region2: #{fc_pallas.1} parent=1 // pred_check
      _
    $region3: #{fc_pallas.1} parent=1 // pred_check_branch
      %12 = sbr.rel (0) target = $region5
    $region4: #{fc_pallas.1} parent=1 // pred_region
      _
    $region5: #{fc_pallas.1} parent=1 // pred_fallthru
      _
    // Predicated region
    $region6: #{fc_pallas.1} parent=1 // pred_check
      _
    $region7: #{fc_pallas.1} parent=1 // pred_check_branch
      %14 = sbr.rel (0) target = $region9
    $region8: #{fc_pallas.1} parent=1 // pred_region
      _
    $region9: #{fc_pallas.1} parent=1 // pred_fallthru
      _
    // Predicated region
    $region10: #{fc_pallas.1} parent=1 // pred_check
      _
    $region11: #{fc_pallas.1} parent=1 // pred_check_branch
      %16 = sbr.rel (0) target = $region13
    $region12: #{fc_pallas.1} parent=1 // pred_region
      _
    $region13: #{fc_pallas.1} parent=1 // pred_fallthru
      _
    // Predicated region
    $region14: #{fc_pallas.1} parent=1 // pred_check
      _
    $region15: #{fc_pallas.1} parent=1 // pred_check_branch
      %18 = sbr.rel (0) target = $region17
    $region16: #{fc_pallas.1} parent=1 // pred_region
      _
    $region17: #{fc_pallas.1} parent=1 // pred_fallthru
      _
    // Predicated region
    $region18: #{fc_pallas.1} parent=1 // pred_check
      _
    $region19: #{fc_pallas.1} parent=1 // pred_check_branch
      %20 = sbr.rel (0) target = $region21
    $region20: #{fc_pallas.1} parent=1 // pred_region
      _
    $region21: #{fc_pallas.1} parent=1 // pred_fallthru
      _
    %v21 = vld [vmem:[%s0] sm:$0xff]
    %v22 = vld [vmem:[%s0 + $0x8] sm:$0xff]
    %v23 = vld [vmem:[%s0 + $0x10] sm:$0xff]
    %v24 = vld [vmem:[%s0 + $0x18] sm:$0xff]
    %v25 = vld [vmem:[%s2] sm:$0xf]
    %v26 = vld [vmem:[%s1] sm:$0xff]
    %v27 = vld [vmem:[%s1 + $0x8] sm:$0xff]
    %v28 = vld [vmem:[%s1 + $0x10] sm:$0xff]
    %v29 = vld [vmem:[%s1 + $0x18] sm:$0xff]
    %v30 = vld [vmem:[%s3] sm:$0xff]
    %v31 = vld [vmem:[%s3 + $0x8] sm:$0xff]
    %v32 = vld [vmem:[%s3 + $0x10] sm:$0xff]
    %v33 = vld [vmem:[%s3 + $0x18] sm:$0xff]
    %vm34 = vcmask 261120
    %v36 = vsel %vm34, %v26, 0
    %v39 = vsel %vm34, %v27, 0
    %v42 = vsel %vm34, %v28, 0
    %v45 = vsel %vm34, %v29, 0
    %47 = vmatprep.subr.mxu0 0.0
    %48 = vmatpush1.msra.mxu0 %v30
    %49 = vmatprep.subr.mxu0 0.0
    %50 = vmatpush1.msra.mxu0 %v31
    %51 = vmatprep.subr.mxu0 0.0
    %52 = vmatpush1.msra.mxu0 %v32
    %53 = vmatprep.subr.mxu0 0.0
    %54 = vmatpush1.msra.mxu0 %v33
    %55 = vmatprep.subr.mxu0 0.0
    %56 = vmatpush1.msra.mxu0 0.0
    %57 = vmatprep.subr.mxu0 0.0
    %58 = vmatpush1.msra.mxu0 0.0
    %59 = vmatprep.subr.mxu0 0.0
    %60 = vmatpush1.msra.mxu0 0.0
    %61 = vmatprep.subr.mxu0 0.0
    %62 = vmatpush1.msra.mxu0 0.0
    %63 = vmatprep.subr.mxu0 0.0
    %64 = vmatpush1.msra.mxu0 0.0
    %65 = vmatprep.subr.mxu0 0.0
    %66 = vmatpush1.msra.mxu0 0.0
    %67 = vmatprep.subr.mxu0 0.0
    %68 = vmatpush1.msra.mxu0 0.0
    %69 = vmatprep.subr.mxu0 0.0
    %70 = vmatpush1.msra.mxu0 0.0
    %71 = vmatprep.subr.mxu0 0.0
    %72 = vmatpush1.msra.mxu0 0.0
    %73 = vmatprep.subr.mxu0 0.0
    %74 = vmatpush1.msra.mxu0 0.0
    %75 = vmatprep.subr.mxu0 0.0
    %76 = vmatpush1.msra.mxu0 0.0
    %77 = vmatprep.subr.mxu0 0.0
    %78 = vmatpush1.msra.mxu0 0.0
    %79 = vmatprep.subr.mxu0 0.0
    %80 = vmatpush1.msra.mxu0 0.0
    %81 = vmatprep.subr.mxu0 0.0
    %82 = vmatpush1.msra.mxu0 0.0
    %83 = vmatprep.subr.mxu0 0.0
    %84 = vmatpush1.msra.mxu0 0.0
    %85 = vmatprep.subr.mxu0 0.0
    %86 = vmatpush1.msra.mxu0 0.0
    %87 = vmatprep.subr.mxu0 0.0
    %88 = vmatpush1.msra.mxu0 0.0
    %89 = vmatprep.subr.mxu0 0.0
    %90 = vmatpush1.msra.mxu0 0.0
    %91 = vmatprep.subr.mxu0 0.0
    %92 = vmatpush1.msra.mxu0 0.0
    %93 = vmatprep.subr.mxu0 0.0
    %94 = vmatpush1.msra.mxu0 0.0
    %95 = vmatprep.subr.mxu0 0.0
    %96 = vmatpush1.msra.mxu0 0.0
    %97 = vmatprep.subr.mxu0 0.0
    %98 = vmatpush1.msra.mxu0 0.0
    %99 = vmatprep.subr.mxu0 0.0
    %100 = vmatpush1.msra.mxu0 0.0
    %101 = vmatprep.subr.mxu0 0.0
    %102 = vmatpush1.msra.mxu0 0.0
    %103 = vmatprep.subr.mxu0 0.0
    %104 = vmatpush1.msra.mxu0 0.0
    %105 = vmatprep.subr.mxu0 0.0
    %106 = vmatpush1.msra.mxu0 0.0
    %107 = vmatprep.subr.mxu0 0.0
    %108 = vmatpush1.msra.mxu0 0.0
    %109 = vmatprep.subr.mxu0 0.0
    %110 = vmatpush1.msra.mxu0 0.0
    %111 = vmatprep.mubr.f32.mxu0 0.0
    %112 = vmatmul.mubr.f32.gmra.mrb[0].mxu0 %v36
    %v113 = vpop.f32.mrb[0].mxu0
    %v114 = vadd.f32 0.0, %v113
    %v115 = vpop.f32.mrb[0].mxu0
    %116 = vmatprep.mubr.f32.mxu0 0.0
    %117 = vmatmul.mubr.f32.gmra.mrb[0].mxu0 %v39
    %v118 = vpop.f32.mrb[0].mxu0
    %v119 = vadd.f32 0.0, %v118
    %v120 = vpop.f32.mrb[0].mxu0
    %121 = vmatprep.mubr.f32.mxu0 0.0
    %122 = vmatmul.mubr.f32.gmra.mrb[0].mxu0 %v42
    %v123 = vpop.f32.mrb[0].mxu0
    %v124 = vadd.f32 0.0, %v123
    %v125 = vpop.f32.mrb[0].mxu0
    %126 = vmatprep.mubr.f32.mxu0 0.0
    %127 = vmatmul.mubr.f32.gmra.mrb[0].mxu0 %v45
    %v128 = vpop.f32.mrb[0].mxu0
    %v129 = vadd.f32 0.0, %v128
    %v130 = vpop.f32.mrb[0].mxu0
    %131 = vdwg.mxu0
    %vm132 = vcmask 31744
    %v134 = vsel %vm132, %v21, 0
    %v137 = vsel %vm132, %v22, 0
    %v140 = vsel %vm132, %v23, 0
    %v143 = vsel %vm132, %v24, 0
    %vm145 = vcmask 1043456
    %v147 = vsel %vm145, %v25, 0
    %149 = vmatprep.subr.mxu0 0.0
    %150 = vmatpush1.msra.mxu0 %v147
    %151 = vmatprep.subr.mxu0 0.0
    %152 = vmatpush1.msra.mxu0 0.0
    %153 = vmatprep.subr.mxu0 0.0
    %154 = vmatpush1.msra.mxu0 0.0
    %155 = vmatprep.subr.mxu0 0.0
    %156 = vmatpush1.msra.mxu0 0.0
    %157 = vmatprep.subr.mxu0 0.0
    %158 = vmatpush1.msra.mxu0 0.0
    %159 = vmatprep.subr.mxu0 0.0
    %160 = vmatpush1.msra.mxu0 0.0
    %161 = vmatprep.subr.mxu0 0.0
    %162 = vmatpush1.msra.mxu0 0.0
    %163 = vmatprep.subr.mxu0 0.0
    %164 = vmatpush1.msra.mxu0 0.0
    %165 = vmatprep.subr.mxu0 0.0
    %166 = vmatpush1.msra.mxu0 0.0
    %167 = vmatprep.subr.mxu0 0.0
    %168 = vmatpush1.msra.mxu0 0.0
    %169 = vmatprep.subr.mxu0 0.0
    %170 = vmatpush1.msra.mxu0 0.0
    %171 = vmatprep.subr.mxu0 0.0
    %172 = vmatpush1.msra.mxu0 0.0
    %173 = vmatprep.subr.mxu0 0.0
    %174 = vmatpush1.msra.mxu0 0.0
    %175 = vmatprep.subr.mxu0 0.0
    %176 = vmatpush1.msra.mxu0 0.0
    %177 = vmatprep.subr.mxu0 0.0
    %178 = vmatpush1.msra.mxu0 0.0
    %179 = vmatprep.subr.mxu0 0.0
    %180 = vmatpush1.msra.mxu0 0.0
    %181 = vmatprep.subr.mxu0 0.0
    %182 = vmatpush1.msra.mxu0 0.0
    %183 = vmatprep.subr.mxu0 0.0
    %184 = vmatpush1.msra.mxu0 0.0
    %185 = vmatprep.subr.mxu0 0.0
    %186 = vmatpush1.msra.mxu0 0.0
    %187 = vmatprep.subr.mxu0 0.0
    %188 = vmatpush1.msra.mxu0 0.0
    %189 = vmatprep.subr.mxu0 0.0
    %190 = vmatpush1.msra.mxu0 0.0
    %191 = vmatprep.subr.mxu0 0.0
    %192 = vmatpush1.msra.mxu0 0.0
    %193 = vmatprep.subr.mxu0 0.0
    %194 = vmatpush1.msra.mxu0 0.0
    %195 = vmatprep.subr.mxu0 0.0
    %196 = vmatpush1.msra.mxu0 0.0
    %197 = vmatprep.subr.mxu0 0.0
    %198 = vmatpush1.msra.mxu0 0.0
    %199 = vmatprep.subr.mxu0 0.0
    %200 = vmatpush1.msra.mxu0 0.0
    %201 = vmatprep.subr.mxu0 0.0
    %202 = vmatpush1.msra.mxu0 0.0
    %203 = vmatprep.subr.mxu0 0.0
    %204 = vmatpush1.msra.mxu0 0.0
    %205 = vmatprep.subr.mxu0 0.0
    %206 = vmatpush1.msra.mxu0 0.0
    %207 = vmatprep.subr.mxu0 0.0
    %208 = vmatpush1.msra.mxu0 0.0
    %209 = vmatprep.subr.mxu0 0.0
    %210 = vmatpush1.msra.mxu0 0.0
    %211 = vmatprep.subr.mxu0 0.0
    %212 = vmatpush1.msra.mxu0 0.0
    %213 = vmatprep.mubr.f32.mxu0 0.0
    %214 = vmatmul.mubr.f32.gmra.mrb[0].mxu0 %v134
    %v215 = vpop.f32.mrb[0].mxu0
    %v216 = vadd.f32 %v114, %v215
    %v217 = vpop.f32.mrb[0].mxu0
    %218 = vmatprep.mubr.f32.mxu0 0.0
    %219 = vmatmul.mubr.f32.gmra.mrb[0].mxu0 %v137
    %v220 = vpop.f32.mrb[0].mxu0
    %v221 = vadd.f32 %v119, %v220
    %v222 = vpop.f32.mrb[0].mxu0
    %223 = vmatprep.mubr.f32.mxu0 0.0
    %224 = vmatmul.mubr.f32.gmra.mrb[0].mxu0 %v140
    %v225 = vpop.f32.mrb[0].mxu0
    %v226 = vadd.f32 %v124, %v225
    %v227 = vpop.f32.mrb[0].mxu0
    %228 = vmatprep.mubr.f32.mxu0 0.0
    %229 = vmatmul.mubr.f32.gmra.mrb[0].mxu0 %v143
    %v230 = vpop.f32.mrb[0].mxu0
    %v231 = vadd.f32 %v129, %v230
    %v232 = vpop.f32.mrb[0].mxu0
    %233 = vdwg.mxu0
    %v234 = vxor.u32 %v216, 2147483648
    %v235 = vxor.u32 %v221, 2147483648
    %v236 = vxor.u32 %v226, 2147483648
    %v237 = vxor.u32 %v231, 2147483648
    %v238 = vmul.f32 %v234, 1.442695
    %v239 = vpow.pop %v238
    %v240 = vmul.f32 %v235, 1.442695
    %v241 = vpow.pop %v240
    %v242 = vmul.f32 %v236, 1.442695
    %v243 = vpow.pop %v242
    %v244 = vmul.f32 %v237, 1.442695
    %v245 = vpow.pop %v244
    %v246 = vadd.f32 %v239, 1.0
    %v247 = vadd.f32 %v241, 1.0
    %v248 = vadd.f32 %v243, 1.0
    %v249 = vadd.f32 %v245, 1.0
    %v250 = vrcp.pop %v246
    %v251 = vmul.f32 1.0, %v250
    %v252 = vrcp.pop %v247
    %v253 = vmul.f32 1.0, %v252
    %v254 = vrcp.pop %v248
    %v255 = vmul.f32 1.0, %v254
    %v256 = vrcp.pop %v249
    %v257 = vmul.f32 1.0, %v256
    %v258 = vld [vmem:[%s4] sm:$0x1]
    %v260 = vlaneseq
    %v261 = vshrl.u32 %v260, 7
    %v262 = vsub.s32 0, %v261
    %v263 = vrot.slane %v258, %v262
    %v265 = vadd.f32 %v251, %v263
    %v266 = vadd.f32 %v253, %v263
    %v267 = vadd.f32 %v255, %v263
    %v268 = vadd.f32 %v257, %v263
    %269 = vst [vmem:[#allocation2] sm:$0xff] %v265
    %270 = vst [vmem:[#allocation2 + $0x8] sm:$0xff] %v266
    %271 = vst [vmem:[#allocation2 + $0x10] sm:$0xff] %v267
    %272 = vst [vmem:[#allocation2 + $0x18] sm:$0xff] %v268
    // Predicated region
    $region22: #{fc_pallas.1} parent=1 // pred_check
      _
    $region23: #{fc_pallas.1} parent=1 // pred_check_branch
      %274 = sbr.rel (0) target = $region25
    $region24: #{fc_pallas.1} parent=1 // pred_region
      %s276 = ssub.s32 512, 512
      %277 = vsyncadd [#allocation3], %s276
      %s278 = sshll.u32 [#allocation2], 4
      %s279 = int_to_ptr.vmem [resolvable:$true] %s278
      %284 = dma.vmem_to_hbm [thread:$0]  %s279, 512, %s5, [#allocation3], 128, 128, 8
    $region25: #{fc_pallas.1} parent=1 // pred_fallthru
      _
    // Predicated region
    $region26: #{fc_pallas.1} parent=1 // pred_check
      _
    $region27: #{fc_pallas.1} parent=1 // pred_check_branch
      %286 = sbr.rel (0) target = $region29
    $region28: #{fc_pallas.1} parent=1 // pred_region
      %287 = dma.done [#allocation3], 512
    $region29: #{fc_pallas.1} parent=1 // pred_fallthru
      _
    %288 = vsyncpa [#allocation3], 1

</llo_original>
